<compile_context>
chip_gen: v7x
topology: tpu7x:2x2x1
jax: 0.10.0
libtpu: 0.0.40
codegen_flags: <defaults>
</compile_context>

<pallas_src>
import functools
import math
import random as _pyrandom

import jax
import jax.numpy as jnp
from jax import lax
from jax.experimental import pallas as pl
from jax.experimental.pallas import tpu as pltpu


# ----------------------------------------------------------------------------
# helpers
# ----------------------------------------------------------------------------
def _vmem_capacity_bytes() -> int:
    try:
        return int(pltpu.get_tpu_info().vmem_capacity_bytes)
    except Exception:
        return 64 * 1024 * 1024  # conservative lower bound (v7x per-TC)


def _bilinear_weight_matrix(in_size: int, out_size: int) -> jnp.ndarray:
    """(out_size, in_size) f32 matrix: PyTorch bilinear, align_corners=False."""
    scale = in_size / out_size
    dst = jnp.arange(out_size, dtype=jnp.float32)
    # area_pixel_compute_source_index: clamp negative source coords to 0.
    src = jnp.maximum((dst + 0.5) * scale - 0.5, 0.0)
    i0 = jnp.clip(jnp.floor(src).astype(jnp.int32), 0, in_size - 1)
    i1 = jnp.minimum(i0 + 1, in_size - 1)
    lam = src - i0.astype(jnp.float32)
    rows = jnp.arange(out_size)
    w = jnp.zeros((out_size, in_size), dtype=jnp.float32)
    w = w.at[rows, i0].add(1.0 - lam)
    w = w.at[rows, i1].add(lam)
    return w


@functools.lru_cache(maxsize=None)
def _resize_weights(h: int, w: int, new_h: int, new_w: int, dtype_name: str):
    dt = jnp.dtype(dtype_name)
    wh = _bilinear_weight_matrix(h, new_h).astype(dt)       # (new_h, h)
    wwt = _bilinear_weight_matrix(w, new_w).T.astype(dt)    # (w, new_w)
    return wh, wwt


# ----------------------------------------------------------------------------
# kernel
# ----------------------------------------------------------------------------
def _resize_kernel(x_ref, wh_ref, wwt_ref, o_ref, *, tn, h_first):
    """Per grid step: resize TN independent (H, W) slices with two matmuls each."""
    cdt = x_ref.dtype

    def body(i, carry):
        frame = x_ref[i]                                           # (H, W)
        if h_first:   # contract H first (fewer FLOPs for this size pair)
            t = jnp.dot(wh_ref[...], frame,
                        preferred_element_type=jnp.float32).astype(cdt)
            o = jnp.dot(t, wwt_ref[...], preferred_element_type=jnp.float32)
        else:         # contract W first
            t = jnp.dot(frame, wwt_ref[...],
                        preferred_element_type=jnp.float32).astype(cdt)
            o = jnp.dot(wh_ref[...], t, preferred_element_type=jnp.float32)
        o_ref[i] = o.astype(o_ref.dtype)
        return carry

    # Bounded loop (tn <= 8): per-iteration live ranges, LLO-visible unroll.
    lax.fori_loop(0, tn, body, 0, unroll=True)


# ----------------------------------------------------------------------------
# tiling / pallas_call construction (cached per shape)
# ----------------------------------------------------------------------------
def _choose_tiling(n, h, w, new_h, new_w, itemsize):
    """TN slices per grid step: ~2 MiB blocks, >=8 grid steps when possible."""
    per_slice = max(h * w, new_h * new_w) * itemsize
    target = 2 << 20
    tn = max(1, target // max(per_slice, 1))
    tn = int(min(tn, 8, n))                      # bound the in-kernel unroll
    if n >= 8:
        tn = min(tn, -(-n // 8))                 # >= 8 steps (>=4 per TC on v7x)
    tn = max(int(tn), 1)
    # Prefer a TN that divides N (avoids a ragged last block) when it costs
    # less than 2x granularity; otherwise keep TN (Pallas masks the edge block).
    for cand in range(tn, 0, -1):
        if n % cand == 0:
            if cand * 2 >= tn:
                tn = cand
            break
    ngrid = -(-n // tn)
    return int(tn), int(ngrid)


@functools.lru_cache(maxsize=None)
def _build_resize_fn(n, h, w, new_h, new_w, tn, ngrid, h_first, dtype_name):
    dt = jnp.dtype(dtype_name)
    itemsize = dt.itemsize
    kernel = functools.partial(_resize_kernel, tn=tn, h_first=h_first)

    # VMEM sizing from actual need (+headroom), well under per-core capacity.
    in_blk = tn * h * w * itemsize
    out_blk = tn * new_h * new_w * itemsize
    wt_bytes = (new_h * h + w * new_w) * itemsize
    inter = (new_h * w if h_first else h * new_w) * 4
    need = 2 * (in_blk + out_blk + wt_bytes) + inter + (4 << 20)
    cap = _vmem_capacity_bytes()
    vmem_limit = int(min(max(need + (16 << 20), 32 << 20), cap - (8 << 20)))

    flops_per_slice = (2 * (new_h * h * w + new_h * w * new_w) if h_first
                       else 2 * (h * w * new_w + new_h * h * new_w))

    call = pl.pallas_call(
        kernel,
        out_shape=jax.ShapeDtypeStruct((n, new_h, new_w), dt),
        grid_spec=pltpu.PrefetchScalarGridSpec(
            num_scalar_prefetch=0,
            grid=(ngrid,),
            in_specs=[
                # Trailing dims == full array dims -> no alignment padding needed.
                pl.BlockSpec((tn, h, w), lambda i: (i, 0, 0)),        # frames
                pl.BlockSpec((new_h, h), lambda i: (0, 0)),           # Wh (constant)
                pl.BlockSpec((w, new_w), lambda i: (0, 0)),           # Ww^T (constant)
            ],
            out_specs=pl.BlockSpec((tn, new_h, new_w), lambda i: (i, 0, 0)),
        ),
        compiler_params=pltpu.CompilerParams(
            dimension_semantics=("parallel",),    # v7x: shard steps over 2 TCs
            vmem_limit_bytes=vmem_limit,
        ),
        cost_estimate=pl.CostEstimate(
            flops=int(n * flops_per_slice),
            transcendentals=0,
            bytes_accessed=int(itemsize * n * (h * w + new_h * new_w) + wt_bytes),
        ),
    )
    return jax.jit(call)


def bilinear_resize_pallas(x_flat: jnp.ndarray, new_h: int, new_w: int) -> jnp.ndarray:
    """x_flat: (N, H, W) -> (N, new_h, new_w) bilinear resize via Pallas."""
    n, h, w = x_flat.shape
    if x_flat.dtype not in (jnp.dtype(jnp.float32), jnp.dtype(jnp.bfloat16)):
        # Integer / other-float frames: compute in f32 (matmul needs float operands).
        x_flat = x_flat.astype(jnp.float32)
    cdt = jnp.dtype(x_flat.dtype)

    # Contraction order with the fewer FLOPs (static per resize).
    h_first = new_h * w * (h + new_w) <= h * new_w * (w + new_h)

    tn, ngrid = _choose_tiling(n, h, w, new_h, new_w, cdt.itemsize)
    wh, wwt = _resize_weights(h, w, new_h, new_w, cdt.name)
    fn = _build_resize_fn(n, h, w, new_h, new_w, tn, ngrid, bool(h_first), cdt.name)
    return fn(x_flat, wh, wwt)


# ----------------------------------------------------------------------------
# module wrapper
# ----------------------------------------------------------------------------
class RandomShortSideScale:
    """JAX/Pallas equivalent of the PyTorch RandomShortSideScale module."""

    def __init__(self, min_size: int, max_size: int,
                 interpolation: str = "bilinear", backend: str = "pytorch",
                 seed=None):
        assert interpolation == "bilinear", "only bilinear implemented"
        assert backend == "pytorch", "only pytorch backend semantics implemented"
        self._min_size = min_size
        self._max_size = max_size
        # Host RNG (mirrors torch.randint on CPU): no device->host sync, and
        # the output shape must be static anyway.
        self._rng = _pyrandom.Random(seed)

    def __call__(self, x: jnp.ndarray, size=None) -> jnp.ndarray:
        # x: (C, T, H, W)
        assert x.ndim == 4, "expected (C, T, H, W)"
        c, t, h, w = x.shape
        if size is None:
            size = self._rng.randint(self._min_size, self._max_size)  # inclusive
        size = int(size)
        if w < h:
            new_h = int(math.floor((float(h) / w) * size))
            new_w = size
        else:
            new_h = size
            new_w = int(math.floor((float(w) / h) * size))
        # Contiguous leading-dim reshapes: no HBM copy.
        out_flat = bilinear_resize_pallas(x.reshape(c * t, h, w), new_h, new_w)
        return out_flat.reshape(c, t, new_h, new_w)


# ----------------------------------------------------------------------------
# self-test
# ----------------------------------------------------------------------------
if __name__ == "__main__":
    key = jax.random.PRNGKey(0)
    C, T, H, W = 4, 8, 16, 24
    x = jax.random.normal(key, (C, T, H, W), dtype=jnp.float32)

    module = RandomShortSideScale(min_size=12, max_size=20, seed=0)
    out = jax.block_until_ready(module(x))

    c, t, h, w = x.shape
    new_h, new_w = out.shape[2], out.shape[3]
    assert out.shape[:2] == (c, t), out.shape
    assert 12 <= min(new_h, new_w) <= 20, (new_h, new_w)

    # 1) Kernel plumbing check vs pure-JAX einsum built from the same weights.
    wh_ref = _bilinear_weight_matrix(h, new_h)
    ww_ref = _bilinear_weight_matrix(w, new_w)
    ref = jnp.einsum("ah,cthw,bw->ctab", wh_ref, x, ww_ref)
    assert jnp.allclose(out, ref, atol=1e-4, rtol=1e-4), "mismatch vs einsum reference"

    # 2) Analytic semantics check (PyTorch align_corners=False): resizing a
    #    width-ramp must give clip((j + 0.5)*W/new_w - 0.5, 0, W-1).
    ramp = jnp.broadcast_to(jnp.arange(W, dtype=jnp.float32), (1, H, W))
    r_out = jax.block_until_ready(bilinear_resize_pallas(ramp, 8, 10))
    j = jnp.arange(10, dtype=jnp.float32)
    expect = jnp.clip((j + 0.5) * (W / 10.0) - 0.5, 0.0, float(W - 1))
    assert jnp.allclose(r_out[0, 0], expect, atol=1e-4), "bilinear semantics mismatch"

    print("KERNEL_OK")
</pallas_src>

<mosaic_0001>
module attributes {stable_mosaic.version = 11 : i64} {
  func.func @_resize_kernel(%arg0: i32, %arg1: memref<4x16x24xf32, #tpu.memory_space<vmem>>, %arg2: memref<18x16xf32, #tpu.memory_space<vmem>>, %arg3: memref<24x27xf32, #tpu.memory_space<vmem>>, %arg4: memref<4x18x27xf32, #tpu.memory_space<vmem>>) attributes {dimension_semantics = [#tpu.dimension_semantics<parallel>], iteration_bounds = array<i64: 8>, scalar_prefetch = 0 : i64, scratch_operands = 0 : i64, tpu.core_type = #tpu.core_type<tc>, window_params = [{transform_indices = @transform_0, window_bounds = array<i64: 4, 16, 24>}, {pipeline_mode = #tpu.pipeline_mode<synchronous>, transform_indices = @transform_1, window_bounds = array<i64: 18, 16>}, {pipeline_mode = #tpu.pipeline_mode<synchronous>, transform_indices = @transform_2, window_bounds = array<i64: 24, 27>}, {transform_indices = @transform_3, window_bounds = array<i64: 4, 18, 27>}]} {
    %c0_i32 = arith.constant 0 : i32
    %0 = arith.index_cast %c0_i32 : i32 to index
    %c0 = arith.constant 0 : index
    %c0_0 = arith.constant 0 : index
    %1 = vector.load %arg1[%0, %c0, %c0_0] : memref<4x16x24xf32, #tpu.memory_space<vmem>>, vector<1x16x24xf32>
    %2 = vector.shape_cast %1 : vector<1x16x24xf32> to vector<16x24xf32>
    %c0_1 = arith.constant 0 : index
    %c0_2 = arith.constant 0 : index
    %3 = vector.load %arg3[%c0_1, %c0_2] : memref<24x27xf32, #tpu.memory_space<vmem>>, vector<24x27xf32>
    %cst = arith.constant dense<0.000000e+00> : vector<16x27xf32>
    %4 = tpu.matmul %2, %3, %cst {dimension_numbers = #tpu.dot_dimension_numbers<[1], [0], [0], [1], [0, 0, 1, 1], [], []>} : vector<16x24xf32>, vector<24x27xf32>, vector<16x27xf32> -> vector<16x27xf32>
    %c0_3 = arith.constant 0 : index
    %c0_4 = arith.constant 0 : index
    %5 = vector.load %arg2[%c0_3, %c0_4] : memref<18x16xf32, #tpu.memory_space<vmem>>, vector<18x16xf32>
    %cst_5 = arith.constant dense<0.000000e+00> : vector<18x27xf32>
    %6 = tpu.matmul %5, %4, %cst_5 {dimension_numbers = #tpu.dot_dimension_numbers<[1], [0], [0], [1], [0, 0, 1, 1], [], []>} : vector<18x16xf32>, vector<16x27xf32>, vector<18x27xf32> -> vector<18x27xf32>
    %7 = arith.index_cast %c0_i32 : i32 to index
    %c0_6 = arith.constant 0 : index
    %c0_7 = arith.constant 0 : index
    %8 = vector.load %arg4[%7, %c0_6, %c0_7] : memref<4x18x27xf32, #tpu.memory_space<vmem>>, vector<1x18x27xf32>
    %9 = vector.shape_cast %8 : vector<1x18x27xf32> to vector<18x27xf32>
    %10 = vector.shape_cast %6 : vector<18x27xf32> to vector<1x18x27xf32>
    tpu.vector_store %arg4[%7, %c0_6, %c0_7], %10 {strides = array<i32>} : memref<4x18x27xf32, #tpu.memory_space<vmem>>, vector<1x18x27xf32>,
    %c1_i32 = arith.constant 1 : i32
    %11 = arith.index_cast %c1_i32 : i32 to index
    %c0_8 = arith.constant 0 : index
    %c0_9 = arith.constant 0 : index
    %12 = vector.load %arg1[%11, %c0_8, %c0_9] : memref<4x16x24xf32, #tpu.memory_space<vmem>>, vector<1x16x24xf32>
    %13 = vector.shape_cast %12 : vector<1x16x24xf32> to vector<16x24xf32>
    %c0_10 = arith.constant 0 : index
    %c0_11 = arith.constant 0 : index
    %14 = vector.load %arg3[%c0_10, %c0_11] : memref<24x27xf32, #tpu.memory_space<vmem>>, vector<24x27xf32>
    %cst_12 = arith.constant dense<0.000000e+00> : vector<16x27xf32>
    %15 = tpu.matmul %13, %14, %cst_12 {dimension_numbers = #tpu.dot_dimension_numbers<[1], [0], [0], [1], [0, 0, 1, 1], [], []>} : vector<16x24xf32>, vector<24x27xf32>, vector<16x27xf32> -> vector<16x27xf32>
    %c0_13 = arith.constant 0 : index
    %c0_14 = arith.constant 0 : index
    %16 = vector.load %arg2[%c0_13, %c0_14] : memref<18x16xf32, #tpu.memory_space<vmem>>, vector<18x16xf32>
    %cst_15 = arith.constant dense<0.000000e+00> : vector<18x27xf32>
    %17 = tpu.matmul %16, %15, %cst_15 {dimension_numbers = #tpu.dot_dimension_numbers<[1], [0], [0], [1], [0, 0, 1, 1], [], []>} : vector<18x16xf32>, vector<16x27xf32>, vector<18x27xf32> -> vector<18x27xf32>
    %18 = arith.index_cast %c1_i32 : i32 to index
    %c0_16 = arith.constant 0 : index
    %c0_17 = arith.constant 0 : index
    %19 = vector.load %arg4[%18, %c0_16, %c0_17] : memref<4x18x27xf32, #tpu.memory_space<vmem>>, vector<1x18x27xf32>
    %20 = vector.shape_cast %19 : vector<1x18x27xf32> to vector<18x27xf32>
    %21 = vector.shape_cast %17 : vector<18x27xf32> to vector<1x18x27xf32>
    tpu.vector_store %arg4[%18, %c0_16, %c0_17], %21 {strides = array<i32>} : memref<4x18x27xf32, #tpu.memory_space<vmem>>, vector<1x18x27xf32>,
    %c2_i32 = arith.constant 2 : i32
    %22 = arith.index_cast %c2_i32 : i32 to index
    %c0_18 = arith.constant 0 : index
    %c0_19 = arith.constant 0 : index
    %23 = vector.load %arg1[%22, %c0_18, %c0_19] : memref<4x16x24xf32, #tpu.memory_space<vmem>>, vector<1x16x24xf32>
    %24 = vector.shape_cast %23 : vector<1x16x24xf32> to vector<16x24xf32>
    %c0_20 = arith.constant 0 : index
    %c0_21 = arith.constant 0 : index
    %25 = vector.load %arg3[%c0_20, %c0_21] : memref<24x27xf32, #tpu.memory_space<vmem>>, vector<24x27xf32>
    %cst_22 = arith.constant dense<0.000000e+00> : vector<16x27xf32>
    %26 = tpu.matmul %24, %25, %cst_22 {dimension_numbers = #tpu.dot_dimension_numbers<[1], [0], [0], [1], [0, 0, 1, 1], [], []>} : vector<16x24xf32>, vector<24x27xf32>, vector<16x27xf32> -> vector<16x27xf32>
    %c0_23 = arith.constant 0 : index
    %c0_24 = arith.constant 0 : index
    %27 = vector.load %arg2[%c0_23, %c0_24] : memref<18x16xf32, #tpu.memory_space<vmem>>, vector<18x16xf32>
    %cst_25 = arith.constant dense<0.000000e+00> : vector<18x27xf32>
    %28 = tpu.matmul %27, %26, %cst_25 {dimension_numbers = #tpu.dot_dimension_numbers<[1], [0], [0], [1], [0, 0, 1, 1], [], []>} : vector<18x16xf32>, vector<16x27xf32>, vector<18x27xf32> -> vector<18x27xf32>
    %29 = arith.index_cast %c2_i32 : i32 to index
    %c0_26 = arith.constant 0 : index
    %c0_27 = arith.constant 0 : index
    %30 = vector.load %arg4[%29, %c0_26, %c0_27] : memref<4x18x27xf32, #tpu.memory_space<vmem>>, vector<1x18x27xf32>
    %31 = vector.shape_cast %30 : vector<1x18x27xf32> to vector<18x27xf32>
    %32 = vector.shape_cast %28 : vector<18x27xf32> to vector<1x18x27xf32>
    tpu.vector_store %arg4[%29, %c0_26, %c0_27], %32 {strides = array<i32>} : memref<4x18x27xf32, #tpu.memory_space<vmem>>, vector<1x18x27xf32>,
    %c3_i32 = arith.constant 3 : i32
    %33 = arith.index_cast %c3_i32 : i32 to index
    %c0_28 = arith.constant 0 : index
    %c0_29 = arith.constant 0 : index
    %34 = vector.load %arg1[%33, %c0_28, %c0_29] : memref<4x16x24xf32, #tpu.memory_space<vmem>>, vector<1x16x24xf32>
    %35 = vector.shape_cast %34 : vector<1x16x24xf32> to vector<16x24xf32>
    %c0_30 = arith.constant 0 : index
    %c0_31 = arith.constant 0 : index
    %36 = vector.load %arg3[%c0_30, %c0_31] : memref<24x27xf32, #tpu.memory_space<vmem>>, vector<24x27xf32>
    %cst_32 = arith.constant dense<0.000000e+00> : vector<16x27xf32>
    %37 = tpu.matmul %35, %36, %cst_32 {dimension_numbers = #tpu.dot_dimension_numbers<[1], [0], [0], [1], [0, 0, 1, 1], [], []>} : vector<16x24xf32>, vector<24x27xf32>, vector<16x27xf32> -> vector<16x27xf32>
    %c0_33 = arith.constant 0 : index
    %c0_34 = arith.constant 0 : index
    %38 = vector.load %arg2[%c0_33, %c0_34] : memref<18x16xf32, #tpu.memory_space<vmem>>, vector<18x16xf32>
    %cst_35 = arith.constant dense<0.000000e+00> : vector<18x27xf32>
    %39 = tpu.matmul %38, %37, %cst_35 {dimension_numbers = #tpu.dot_dimension_numbers<[1], [0], [0], [1], [0, 0, 1, 1], [], []>} : vector<18x16xf32>, vector<16x27xf32>, vector<18x27xf32> -> vector<18x27xf32>
    %40 = arith.index_cast %c3_i32 : i32 to index
    %c0_36 = arith.constant 0 : index
    %c0_37 = arith.constant 0 : index
    %41 = vector.load %arg4[%40, %c0_36, %c0_37] : memref<4x18x27xf32, #tpu.memory_space<vmem>>, vector<1x18x27xf32>
    %42 = vector.shape_cast %41 : vector<1x18x27xf32> to vector<18x27xf32>
    %43 = vector.shape_cast %39 : vector<18x27xf32> to vector<1x18x27xf32>
    tpu.vector_store %arg4[%40, %c0_36, %c0_37], %43 {strides = array<i32>} : memref<4x18x27xf32, #tpu.memory_space<vmem>>, vector<1x18x27xf32>,
    %c4_i32 = arith.constant 4 : i32
    return
  }
  func.func @transform_0(%arg0: i32) -> (i32, i32, i32) {
    %c0_i32 = arith.constant 0 : i32
    %c0_i32_0 = arith.constant 0 : i32
    %c0_i32_1 = arith.constant 0 : i32
    return %arg0, %c0_i32, %c0_i32_0 : i32, i32, i32
  }
  func.func @transform_1(%arg0: i32) -> (i32, i32) {
    %c0_i32 = arith.constant 0 : i32
    %c0_i32_0 = arith.constant 0 : i32
    %c0_i32_1 = arith.constant 0 : i32
    return %c0_i32, %c0_i32_0 : i32, i32
  }
  func.func @transform_2(%arg0: i32) -> (i32, i32) {
    %c0_i32 = arith.constant 0 : i32
    %c0_i32_0 = arith.constant 0 : i32
    %c0_i32_1 = arith.constant 0 : i32
    return %c0_i32, %c0_i32_0 : i32, i32
  }
  func.func @transform_3(%arg0: i32) -> (i32, i32, i32) {
    %c0_i32 = arith.constant 0 : i32
    %c0_i32_0 = arith.constant 0 : i32
    %c0_i32_1 = arith.constant 0 : i32
    return %arg0, %c0_i32, %c0_i32_0 : i32, i32, i32
  }
}

</mosaic_0001>

<llo_original>
// kernel: tpu_custom_call.1
$region0: #{tpu_custom_call.1}
  #allocation0 [shape = 'u32[]', space=smem, size = 0x4, offset = 0x4, fixed_abs, tag = 'smem constant byte address 0x4 - core index']
  #allocation1 [shape = 'u32[144,128]{1,0:T(1,128)}', space=vmem, size = 0x12000, scoped, tag = 'internal scratch']
  %s0 = inlined_call_operand.vmem [shape: f32[32,16,24], index: 0, kind: input, shape index: {}]
  %s1 = inlined_call_operand.vmem [shape: f32[18,16], index: 1, kind: input, shape index: {}]
  %s2 = inlined_call_operand.vmem [shape: f32[24,27], index: 2, kind: input, shape index: {}]
  %s3 = inlined_call_operand.vmem [shape: f32[32,18,27], index: 3, kind: output, shape index: {}]
  %s4 = sld [smem:[#allocation0]]
  $region45: #{tpu_custom_call.1} parent=0
    _
  %s6 = ssub.s32 1, %s4
  %s7 = scalar_select 0, %s6, %s4
  loop: start=0, step=1, limit=10
  $region2: #{tpu_custom_call.1} parent=0 // loop_pre_header
    _
  $region3: #{tpu_custom_call.1} parent=0 // loop_header
    %s9 = sphi 0, %s13
    %p10 = scmp.ge.s32.totalorder %s9, 10
    %s19 = sphi 0, %s21
    %s22 = sphi 0, %s19
    %s23 = sphi 0, %s22
    %s39 = sphi 0, %s23
    %s43 = sphi 0, %s43
    %s45 = sphi 0, %s43
    %s46 = sphi 0, %s45
    %s60 = sphi 0, %s46
    %s64 = sphi 0, %s64
    %s66 = sphi 0, %s64
    %s67 = sphi 0, %s66
    %s81 = sphi 0, %s67
    %s87 = sphi 0, %s89
    %s90 = sphi 0, %s87
    %s91 = sphi 0, %s90
    %s107 = sphi 0, %s91
  $region4: #{tpu_custom_call.1} parent=0 // loop_header_branch
    %12 = sbr.rel (%p10) target = $region8
  $region5: #{tpu_custom_call.1} parent=0 // loop_body
    %s14 = ssub.s32 %s9, 1
    %s15 = ssub.s32 %s9, 2
    %s16 = sadd.s32 %s9, 1
    %s17 = ssub.s32 %s9, %s16
    %p18 = scmp.eq.s32.totalorder %s17, 0
    %s20 = sadd.s32 %s19, 1
    %s21 = scalar_select %p18, %s19, %s20
    %p24 = pneg %p18
    %p25 = scmp.eq.s32.totalorder %s9, 7
    %p26 = por %p24, %p25
    %p27 = scmp.ne.s32.totalorder %s19, %s22
    %p28 = scmp.eq.s32.totalorder %s9, 0
    %p29 = por %p27, %p28
    %p30 = scmp.ne.s32.totalorder %s19, %s22
    %p31 = scmp.eq.s32.totalorder %s14, 7
    %p32 = por %p30, %p31
    %p33 = scmp.ne.s32.totalorder %s22, %s23
    %p34 = scmp.eq.s32.totalorder %s14, 0
    %p35 = por %p33, %p34
    %p36 = scmp.ne.s32.totalorder %s22, %s23
    %p37 = scmp.eq.s32.totalorder %s15, 7
    %p38 = por %p36, %p37
    %p40 = scmp.ne.s32.totalorder %s23, %s39
    %p41 = scmp.eq.s32.totalorder %s15, 0
    %p42 = por %p40, %p41
    %s44 = sadd.s32 %s43, 1
    %p47 = scmp.eq.s32.totalorder %s9, 7
    %p48 = scmp.ne.s32.totalorder %s43, %s45
    %p49 = scmp.eq.s32.totalorder %s9, 0
    %p50 = por %p48, %p49
    %p51 = scmp.ne.s32.totalorder %s43, %s45
    %p52 = scmp.eq.s32.totalorder %s14, 7
    %p53 = por %p51, %p52
    %p54 = scmp.ne.s32.totalorder %s45, %s46
    %p55 = scmp.eq.s32.totalorder %s14, 0
    %p56 = por %p54, %p55
    %p57 = scmp.ne.s32.totalorder %s45, %s46
    %p58 = scmp.eq.s32.totalorder %s15, 7
    %p59 = por %p57, %p58
    %p61 = scmp.ne.s32.totalorder %s46, %s60
    %p62 = scmp.eq.s32.totalorder %s15, 0
    %p63 = por %p61, %p62
    %s65 = sadd.s32 %s64, 1
    %p68 = scmp.eq.s32.totalorder %s9, 7
    %p69 = scmp.ne.s32.totalorder %s64, %s66
    %p70 = scmp.eq.s32.totalorder %s9, 0
    %p71 = por %p69, %p70
    %p72 = scmp.ne.s32.totalorder %s64, %s66
    %p73 = scmp.eq.s32.totalorder %s14, 7
    %p74 = por %p72, %p73
    %p75 = scmp.ne.s32.totalorder %s66, %s67
    %p76 = scmp.eq.s32.totalorder %s14, 0
    %p77 = por %p75, %p76
    %p78 = scmp.ne.s32.totalorder %s66, %s67
    %p79 = scmp.eq.s32.totalorder %s15, 7
    %p80 = por %p78, %p79
    %p82 = scmp.ne.s32.totalorder %s67, %s81
    %p83 = scmp.eq.s32.totalorder %s15, 0
    %p84 = por %p82, %p83
    %s85 = ssub.s32 %s9, %s16
    %p86 = scmp.eq.s32.totalorder %s85, 0
    %s88 = sadd.s32 %s87, 1
    %s89 = scalar_select %p86, %s87, %s88
    %p92 = pneg %p86
    %p93 = scmp.eq.s32.totalorder %s9, 7
    %p94 = por %p92, %p93
    %p95 = scmp.ne.s32.totalorder %s87, %s90
    %p96 = scmp.eq.s32.totalorder %s9, 0
    %p97 = por %p95, %p96
    %p98 = scmp.ne.s32.totalorder %s87, %s90
    %p99 = scmp.eq.s32.totalorder %s14, 7
    %p100 = por %p98, %p99
    %p101 = scmp.ne.s32.totalorder %s90, %s91
    %p102 = scmp.eq.s32.totalorder %s14, 0
    %p103 = por %p101, %p102
    %p104 = scmp.ne.s32.totalorder %s90, %s91
    %p105 = scmp.eq.s32.totalorder %s15, 7
    %p106 = por %p104, %p105
    %p108 = scmp.ne.s32.totalorder %s91, %s107
    %p109 = scmp.eq.s32.totalorder %s15, 0
    %p110 = por %p108, %p109
    %p111 = scmp.le.s32.totalorder 1, %s9
    %p112 = scmp.lt.s32.totalorder %s9, 9
    %p113 = pnand %p111, %p112
    %p114 = pneg %p113
    // Predicated region
    $region9: #{tpu_custom_call.1} parent=5 // pred_check
      _
    $region10: #{tpu_custom_call.1} parent=5 // pred_check_branch
      %116 = sbr.rel (%p113) target = $region12
    $region11: #{tpu_custom_call.1} parent=5 // pred_region
      %s117 = ssub.s32 %s9, 1
      // Predicated region
      $region13: #{tpu_custom_call.1} parent=11 // pred_check
        %p118 = pneg %p56
      $region14: #{tpu_custom_call.1} parent=11 // pred_check_branch
        %120 = sbr.rel (%p118) target = $region16
      $region15: #{tpu_custom_call.1} parent=11 // pred_region
        _
      $region16: #{tpu_custom_call.1} parent=11 // pred_fallthru
        _
      // Predicated region
      $region17: #{tpu_custom_call.1} parent=11 // pred_check
        %p121 = pneg %p77
      $region18: #{tpu_custom_call.1} parent=11 // pred_check_branch
        %123 = sbr.rel (%p121) target = $region20
      $region19: #{tpu_custom_call.1} parent=11 // pred_region
        _
      $region20: #{tpu_custom_call.1} parent=11 // pred_fallthru
        _
    $region12: #{tpu_custom_call.1} parent=5 // pred_fallthru
      _
    %p124 = scmp.lt.s32.totalorder %s9, 8
    // Predicated region
    $region21: #{tpu_custom_call.1} parent=5 // pred_check
      %p125 = pneg %p124
    $region22: #{tpu_custom_call.1} parent=5 // pred_check_branch
      %127 = sbr.rel (%p125) target = $region24
    $region23: #{tpu_custom_call.1} parent=5 // pred_region
      // Predicated region
      $region25: #{tpu_custom_call.1} parent=23 // pred_check
        %p128 = pneg %p29
      $region26: #{tpu_custom_call.1} parent=23 // pred_check_branch
        %130 = sbr.rel (%p128) target = $region28
      $region27: #{tpu_custom_call.1} parent=23 // pred_region
        %s131 = smul.u32 4, %s9
        %p132 = scmp.lt.s32.totalorder %s131, 31
        %s133 = scalar_select %p132, %s131, 31
        %s134 = smul.addr %s133, 2
        %s135 = smul.addr %s134, 8
        %s136 = scalar_lea.vmem %s0, %s135
        %s137 = smul.u32 4, %s9
      $region28: #{tpu_custom_call.1} parent=23 // pred_fallthru
        _
    $region24: #{tpu_custom_call.1} parent=5 // pred_fallthru
      _
    %p138 = scmp.le.s32.totalorder 1, %s9
    %p139 = scmp.lt.s32.totalorder %s9, 9
    %p140 = pnand %p138, %p139
    %p141 = pneg %p140
    // Predicated region
    $region29: #{tpu_custom_call.1} parent=5 // pred_check
      _
    $region30: #{tpu_custom_call.1} parent=5 // pred_check_branch
      %143 = sbr.rel (%p140) target = $region32
    $region31: #{tpu_custom_call.1} parent=5 // pred_region
      %s144 = ssub.s32 %s9, 1
      %s145 = smul.u32 4, %s14
      %p146 = scmp.lt.s32.totalorder %s145, 31
      %s147 = scalar_select %p146, %s145, 31
      %s148 = smul.addr %s147, 2
      %s149 = smul.addr %s148, 8
      %s150 = scalar_lea.vmem %s0, %s149
      %p151 = pneg %p35
      %p152 = pneg %p32
      %p153 = pneg %p56
      %p154 = pneg %p53
      %p155 = pneg %p77
      %p156 = pneg %p74
      %p157 = pneg %p103
      %p158 = pneg %p100
      %s159 = smul.u32 4, %s14
      %p160 = scmp.lt.s32.totalorder %s159, 31
      %s161 = scalar_select %p160, %s159, 31
      %s162 = smul.addr %s161, 3
      %s163 = smul.addr %s162, 8
      %s164 = scalar_lea.vmem %s3, %s163
      %s165 = smul.u32 4, %s14
      %p166 = scmp.lt.s32.totalorder %s165, 31
      %s167 = scalar_select %p166, %s165, 31
      %s168 = smul.addr %s167, 2
      %s169 = smul.addr %s168, 8
      %s170 = scalar_lea.vmem %s0, %s169
      %s171 = smul.u32 4, %s14
      %s172 = smul.u32 4, %s14
      %p173 = scmp.lt.s32.totalorder %s172, 31
      %s174 = scalar_select %p173, %s172, 31
      %s175 = smul.addr %s174, 3
      %s176 = smul.addr %s175, 8
      %s177 = scalar_lea.vmem %s3, %s176
      %s178 = smul.u32 4, %s14
      %v179 = vld [vmem:[%s170] sm:$0xff]
      %v180 = vld [vmem:[%s170 + $0x8] sm:$0xff]
      %v181 = vld [vmem:[%s2] sm:$0xff]
      %v182 = vld [vmem:[%s2 + $0x8] sm:$0xff]
      %v183 = vld [vmem:[%s2 + $0x10] sm:$0xff]
      %vm184 = vcmask 195584
      %v186 = vsel %vm184, %v179, 0
      %v189 = vsel %vm184, %v180, 0
      %191 = vmatprep.subr.mxu0 0.0
      %192 = vmatpush1.msra.mxu0 %v181
      %193 = vmatprep.subr.mxu0 0.0
      %194 = vmatpush1.msra.mxu0 %v182
      %195 = vmatprep.subr.mxu0 0.0
      %196 = vmatpush1.msra.mxu0 %v183
      %197 = vmatprep.subr.mxu0 0.0
      %198 = vmatpush1.msra.mxu0 0.0
      %199 = vmatprep.subr.mxu0 0.0
      %200 = vmatpush1.msra.mxu0 0.0
      %201 = vmatprep.subr.mxu0 0.0
      %202 = vmatpush1.msra.mxu0 0.0
      %203 = vmatprep.subr.mxu0 0.0
      %204 = vmatpush1.msra.mxu0 0.0
      %205 = vmatprep.subr.mxu0 0.0
      %206 = vmatpush1.msra.mxu0 0.0
      %207 = vmatprep.subr.mxu0 0.0
      %208 = vmatpush1.msra.mxu0 0.0
      %209 = vmatprep.subr.mxu0 0.0
      %210 = vmatpush1.msra.mxu0 0.0
      %211 = vmatprep.subr.mxu0 0.0
      %212 = vmatpush1.msra.mxu0 0.0
      %213 = vmatprep.subr.mxu0 0.0
      %214 = vmatpush1.msra.mxu0 0.0
      %215 = vmatprep.subr.mxu0 0.0
      %216 = vmatpush1.msra.mxu0 0.0
      %217 = vmatprep.subr.mxu0 0.0
      %218 = vmatpush1.msra.mxu0 0.0
      %219 = vmatprep.subr.mxu0 0.0
      %220 = vmatpush1.msra.mxu0 0.0
      %221 = vmatprep.subr.mxu0 0.0
      %222 = vmatpush1.msra.mxu0 0.0
      %223 = vmatprep.subr.mxu0 0.0
      %224 = vmatpush1.msra.mxu0 0.0
      %225 = vmatprep.subr.mxu0 0.0
      %226 = vmatpush1.msra.mxu0 0.0
      %227 = vmatprep.subr.mxu0 0.0
      %228 = vmatpush1.msra.mxu0 0.0
      %229 = vmatprep.subr.mxu0 0.0
      %230 = vmatpush1.msra.mxu0 0.0
      %231 = vmatprep.subr.mxu0 0.0
      %232 = vmatpush1.msra.mxu0 0.0
      %233 = vmatprep.subr.mxu0 0.0
      %234 = vmatpush1.msra.mxu0 0.0
      %235 = vmatprep.subr.mxu0 0.0
      %236 = vmatpush1.msra.mxu0 0.0
      %237 = vmatprep.subr.mxu0 0.0
      %238 = vmatpush1.msra.mxu0 0.0
      %239 = vmatprep.subr.mxu0 0.0
      %240 = vmatpush1.msra.mxu0 0.0
      %241 = vmatprep.subr.mxu0 0.0
      %242 = vmatpush1.msra.mxu0 0.0
      %243 = vmatprep.subr.mxu0 0.0
      %244 = vmatpush1.msra.mxu0 0.0
      %245 = vmatprep.subr.mxu0 0.0
      %246 = vmatpush1.msra.mxu0 0.0
      %247 = vmatprep.subr.mxu0 0.0
      %248 = vmatpush1.msra.mxu0 0.0
      %249 = vmatprep.subr.mxu0 0.0
      %250 = vmatpush1.msra.mxu0 0.0
      %251 = vmatprep.subr.mxu0 0.0
      %252 = vmatpush1.msra.mxu0 0.0
      %253 = vmatprep.subr.mxu0 0.0
      %254 = vmatpush1.msra.mxu0 0.0
      %255 = vmatprep.mubr.f32.mxu0 0.0
      %256 = vmatmul.mubr.f32.gmra.mrb[0].mxu0 %v186
      %v257 = vpop.f32.mrb[0].mxu0
      %v258 = vadd.f32 0.0, %v257
      %v259 = vpop.f32.mrb[0].mxu0
      %260 = vmatprep.mubr.f32.mxu0 0.0
      %261 = vmatmul.mubr.f32.gmra.mrb[0].mxu0 %v189
      %v262 = vpop.f32.mrb[0].mxu0
      %v263 = vadd.f32 0.0, %v262
      %v264 = vpop.f32.mrb[0].mxu0
      %265 = vdwg.mxu0
      %v266 = vld [vmem:[%s1] sm:$0xff]
      %v267 = vld [vmem:[%s1 + $0x8] sm:$0xff]
      %v268 = vld [vmem:[%s1 + $0x10] sm:$0x3]
      %vm269 = vcmask 130048
      %v271 = vsel %vm269, %v266, 0
      %v274 = vsel %vm269, %v267, 0
      %v277 = vsel %vm269, %v268, 0
      %279 = vmatprep.subr.mxu0 0.0
      %280 = vmatpush1.msra.mxu0 %v258
      %281 = vmatprep.subr.mxu0 0.0
      %282 = vmatpush1.msra.mxu0 %v263
      %283 = vmatprep.subr.mxu0 0.0
      %284 = vmatpush1.msra.mxu0 0.0
      %285 = vmatprep.subr.mxu0 0.0
      %286 = vmatpush1.msra.mxu0 0.0
      %287 = vmatprep.subr.mxu0 0.0
      %288 = vmatpush1.msra.mxu0 0.0
      %289 = vmatprep.subr.mxu0 0.0
      %290 = vmatpush1.msra.mxu0 0.0
      %291 = vmatprep.subr.mxu0 0.0
      %292 = vmatpush1.msra.mxu0 0.0
      %293 = vmatprep.subr.mxu0 0.0
      %294 = vmatpush1.msra.mxu0 0.0
      %295 = vmatprep.subr.mxu0 0.0
      %296 = vmatpush1.msra.mxu0 0.0
      %297 = vmatprep.subr.mxu0 0.0
      %298 = vmatpush1.msra.mxu0 0.0
      %299 = vmatprep.subr.mxu0 0.0
      %300 = vmatpush1.msra.mxu0 0.0
      %301 = vmatprep.subr.mxu0 0.0
      %302 = vmatpush1.msra.mxu0 0.0
      %303 = vmatprep.subr.mxu0 0.0
      %304 = vmatpush1.msra.mxu0 0.0
      %305 = vmatprep.subr.mxu0 0.0
      %306 = vmatpush1.msra.mxu0 0.0
      %307 = vmatprep.subr.mxu0 0.0
      %308 = vmatpush1.msra.mxu0 0.0
      %309 = vmatprep.subr.mxu0 0.0
      %310 = vmatpush1.msra.mxu0 0.0
      %311 = vmatprep.subr.mxu0 0.0
      %312 = vmatpush1.msra.mxu0 0.0
      %313 = vmatprep.subr.mxu0 0.0
      %314 = vmatpush1.msra.mxu0 0.0
      %315 = vmatprep.subr.mxu0 0.0
      %316 = vmatpush1.msra.mxu0 0.0
      %317 = vmatprep.subr.mxu0 0.0
      %318 = vmatpush1.msra.mxu0 0.0
      %319 = vmatprep.subr.mxu0 0.0
      %320 = vmatpush1.msra.mxu0 0.0
      %321 = vmatprep.subr.mxu0 0.0
      %322 = vmatpush1.msra.mxu0 0.0
      %323 = vmatprep.subr.mxu0 0.0
      %324 = vmatpush1.msra.mxu0 0.0
      %325 = vmatprep.subr.mxu0 0.0
      %326 = vmatpush1.msra.mxu0 0.0
      %327 = vmatprep.subr.mxu0 0.0
      %328 = vmatpush1.msra.mxu0 0.0
      %329 = vmatprep.subr.mxu0 0.0
      %330 = vmatpush1.msra.mxu0 0.0
      %331 = vmatprep.subr.mxu0 0.0
      %332 = vmatpush1.msra.mxu0 0.0
      %333 = vmatprep.subr.mxu0 0.0
      %334 = vmatpush1.msra.mxu0 0.0
      %335 = vmatprep.subr.mxu0 0.0
      %336 = vmatpush1.msra.mxu0 0.0
      %337 = vmatprep.subr.mxu0 0.0
      %338 = vmatpush1.msra.mxu0 0.0
      %339 = vmatprep.subr.mxu0 0.0
      %340 = vmatpush1.msra.mxu0 0.0
      %341 = vmatprep.subr.mxu0 0.0
      %342 = vmatpush1.msra.mxu0 0.0
      %343 = vmatprep.mubr.f32.mxu0 0.0
      %344 = vmatmul.mubr.f32.gmra.mrb[0].mxu0 %v271
      %v345 = vpop.f32.mrb[0].mxu0
      %v346 = vadd.f32 0.0, %v345
      %v347 = vpop.f32.mrb[0].mxu0
      %348 = vmatprep.mubr.f32.mxu0 0.0
      %349 = vmatmul.mubr.f32.gmra.mrb[0].mxu0 %v274
      %v350 = vpop.f32.mrb[0].mxu0
      %v351 = vadd.f32 0.0, %v350
      %v352 = vpop.f32.mrb[0].mxu0
      %353 = vmatprep.mubr.f32.mxu0 0.0
      %354 = vmatmul.mubr.f32.gmra.mrb[0].mxu0 %v277
      %v355 = vpop.f32.mrb[0].mxu0
      %v356 = vadd.f32 0.0, %v355
      %v357 = vpop.f32.mrb[0].mxu0
      %358 = vdwg.mxu0
      %vm359 = vcmask 220160
      %360 = vst.msk [vmem:[%s177] sm:$0xff] %vm359, %v346
      %361 = vst.msk [vmem:[%s177 + $0x8] sm:$0xff] %vm359, %v351
      %vm362 = vcmask 214016
      %363 = vst.msk [vmem:[%s177 + $0x10] sm:$0x3] %vm362, %v356
      %s364 = scalar_lea.vmem %s170, 16
      %v365 = vld [vmem:[%s364] sm:$0xff]
      %v366 = vld [vmem:[%s364 + $0x8] sm:$0xff]
      %v367 = vld [vmem:[%s2] sm:$0xff]
      %v368 = vld [vmem:[%s2 + $0x8] sm:$0xff]
      %v369 = vld [vmem:[%s2 + $0x10] sm:$0xff]
      %v371 = vsel %vm184, %v365, 0
      %v374 = vsel %vm184, %v366, 0
      %376 = vmatprep.subr.mxu0 0.0
      %377 = vmatpush1.msra.mxu0 %v367
      %378 = vmatprep.subr.mxu0 0.0
      %379 = vmatpush1.msra.mxu0 %v368
      %380 = vmatprep.subr.mxu0 0.0
      %381 = vmatpush1.msra.mxu0 %v369
      %382 = vmatprep.subr.mxu0 0.0
      %383 = vmatpush1.msra.mxu0 0.0
      %384 = vmatprep.subr.mxu0 0.0
      %385 = vmatpush1.msra.mxu0 0.0
      %386 = vmatprep.subr.mxu0 0.0
      %387 = vmatpush1.msra.mxu0 0.0
      %388 = vmatprep.subr.mxu0 0.0
      %389 = vmatpush1.msra.mxu0 0.0
      %390 = vmatprep.subr.mxu0 0.0
      %391 = vmatpush1.msra.mxu0 0.0
      %392 = vmatprep.subr.mxu0 0.0
      %393 = vmatpush1.msra.mxu0 0.0
      %394 = vmatprep.subr.mxu0 0.0
      %395 = vmatpush1.msra.mxu0 0.0
      %396 = vmatprep.subr.mxu0 0.0
      %397 = vmatpush1.msra.mxu0 0.0
      %398 = vmatprep.subr.mxu0 0.0
      %399 = vmatpush1.msra.mxu0 0.0
      %400 = vmatprep.subr.mxu0 0.0
      %401 = vmatpush1.msra.mxu0 0.0
      %402 = vmatprep.subr.mxu0 0.0
      %403 = vmatpush1.msra.mxu0 0.0
      %404 = vmatprep.subr.mxu0 0.0
      %405 = vmatpush1.msra.mxu0 0.0
      %406 = vmatprep.subr.mxu0 0.0
      %407 = vmatpush1.msra.mxu0 0.0
      %408 = vmatprep.subr.mxu0 0.0
      %409 = vmatpush1.msra.mxu0 0.0
      %410 = vmatprep.subr.mxu0 0.0
      %411 = vmatpush1.msra.mxu0 0.0
      %412 = vmatprep.subr.mxu0 0.0
      %413 = vmatpush1.msra.mxu0 0.0
      %414 = vmatprep.subr.mxu0 0.0
      %415 = vmatpush1.msra.mxu0 0.0
      %416 = vmatprep.subr.mxu0 0.0
      %417 = vmatpush1.msra.mxu0 0.0
      %418 = vmatprep.subr.mxu0 0.0
      %419 = vmatpush1.msra.mxu0 0.0
      %420 = vmatprep.subr.mxu0 0.0
      %421 = vmatpush1.msra.mxu0 0.0
      %422 = vmatprep.subr.mxu0 0.0
      %423 = vmatpush1.msra.mxu0 0.0
      %424 = vmatprep.subr.mxu0 0.0
      %425 = vmatpush1.msra.mxu0 0.0
      %426 = vmatprep.subr.mxu0 0.0
      %427 = vmatpush1.msra.mxu0 0.0
      %428 = vmatprep.subr.mxu0 0.0
      %429 = vmatpush1.msra.mxu0 0.0
      %430 = vmatprep.subr.mxu0 0.0
      %431 = vmatpush1.msra.mxu0 0.0
      %432 = vmatprep.subr.mxu0 0.0
      %433 = vmatpush1.msra.mxu0 0.0
      %434 = vmatprep.subr.mxu0 0.0
      %435 = vmatpush1.msra.mxu0 0.0
      %436 = vmatprep.subr.mxu0 0.0
      %437 = vmatpush1.msra.mxu0 0.0
      %438 = vmatprep.subr.mxu0 0.0
      %439 = vmatpush1.msra.mxu0 0.0
      %440 = vmatprep.mubr.f32.mxu0 0.0
      %441 = vmatmul.mubr.f32.gmra.mrb[0].mxu0 %v371
      %v442 = vpop.f32.mrb[0].mxu0
      %v443 = vadd.f32 0.0, %v442
      %v444 = vpop.f32.mrb[0].mxu0
      %445 = vmatprep.mubr.f32.mxu0 0.0
      %446 = vmatmul.mubr.f32.gmra.mrb[0].mxu0 %v374
      %v447 = vpop.f32.mrb[0].mxu0
      %v448 = vadd.f32 0.0, %v447
      %v449 = vpop.f32.mrb[0].mxu0
      %450 = vdwg.mxu0
      %v451 = vld [vmem:[%s1] sm:$0xff]
      %v452 = vld [vmem:[%s1 + $0x8] sm:$0xff]
      %v453 = vld [vmem:[%s1 + $0x10] sm:$0x3]
      %v455 = vsel %vm269, %v451, 0
      %v458 = vsel %vm269, %v452, 0
      %v461 = vsel %vm269, %v453, 0
      %463 = vmatprep.subr.mxu0 0.0
      %464 = vmatpush1.msra.mxu0 %v443
      %465 = vmatprep.subr.mxu0 0.0
      %466 = vmatpush1.msra.mxu0 %v448
      %467 = vmatprep.subr.mxu0 0.0
      %468 = vmatpush1.msra.mxu0 0.0
      %469 = vmatprep.subr.mxu0 0.0
      %470 = vmatpush1.msra.mxu0 0.0
      %471 = vmatprep.subr.mxu0 0.0
      %472 = vmatpush1.msra.mxu0 0.0
      %473 = vmatprep.subr.mxu0 0.0
      %474 = vmatpush1.msra.mxu0 0.0
      %475 = vmatprep.subr.mxu0 0.0
      %476 = vmatpush1.msra.mxu0 0.0
      %477 = vmatprep.subr.mxu0 0.0
      %478 = vmatpush1.msra.mxu0 0.0
      %479 = vmatprep.subr.mxu0 0.0
      %480 = vmatpush1.msra.mxu0 0.0
      %481 = vmatprep.subr.mxu0 0.0
      %482 = vmatpush1.msra.mxu0 0.0
      %483 = vmatprep.subr.mxu0 0.0
      %484 = vmatpush1.msra.mxu0 0.0
      %485 = vmatprep.subr.mxu0 0.0
      %486 = vmatpush1.msra.mxu0 0.0
      %487 = vmatprep.subr.mxu0 0.0
      %488 = vmatpush1.msra.mxu0 0.0
      %489 = vmatprep.subr.mxu0 0.0
      %490 = vmatpush1.msra.mxu0 0.0
      %491 = vmatprep.subr.mxu0 0.0
      %492 = vmatpush1.msra.mxu0 0.0
      %493 = vmatprep.subr.mxu0 0.0
      %494 = vmatpush1.msra.mxu0 0.0
      %495 = vmatprep.subr.mxu0 0.0
      %496 = vmatpush1.msra.mxu0 0.0
      %497 = vmatprep.subr.mxu0 0.0
      %498 = vmatpush1.msra.mxu0 0.0
      %499 = vmatprep.subr.mxu0 0.0
      %500 = vmatpush1.msra.mxu0 0.0
      %501 = vmatprep.subr.mxu0 0.0
      %502 = vmatpush1.msra.mxu0 0.0
      %503 = vmatprep.subr.mxu0 0.0
      %504 = vmatpush1.msra.mxu0 0.0
      %505 = vmatprep.subr.mxu0 0.0
      %506 = vmatpush1.msra.mxu0 0.0
      %507 = vmatprep.subr.mxu0 0.0
      %508 = vmatpush1.msra.mxu0 0.0
      %509 = vmatprep.subr.mxu0 0.0
      %510 = vmatpush1.msra.mxu0 0.0
      %511 = vmatprep.subr.mxu0 0.0
      %512 = vmatpush1.msra.mxu0 0.0
      %513 = vmatprep.subr.mxu0 0.0
      %514 = vmatpush1.msra.mxu0 0.0
      %515 = vmatprep.subr.mxu0 0.0
      %516 = vmatpush1.msra.mxu0 0.0
      %517 = vmatprep.subr.mxu0 0.0
      %518 = vmatpush1.msra.mxu0 0.0
      %519 = vmatprep.subr.mxu0 0.0
      %520 = vmatpush1.msra.mxu0 0.0
      %521 = vmatprep.subr.mxu0 0.0
      %522 = vmatpush1.msra.mxu0 0.0
      %523 = vmatprep.subr.mxu0 0.0
      %524 = vmatpush1.msra.mxu0 0.0
      %525 = vmatprep.subr.mxu0 0.0
      %526 = vmatpush1.msra.mxu0 0.0
      %527 = vmatprep.mubr.f32.mxu0 0.0
      %528 = vmatmul.mubr.f32.gmra.mrb[0].mxu0 %v455
      %v529 = vpop.f32.mrb[0].mxu0
      %v530 = vadd.f32 0.0, %v529
      %v531 = vpop.f32.mrb[0].mxu0
      %532 = vmatprep.mubr.f32.mxu0 0.0
      %533 = vmatmul.mubr.f32.gmra.mrb[0].mxu0 %v458
      %v534 = vpop.f32.mrb[0].mxu0
      %v535 = vadd.f32 0.0, %v534
      %v536 = vpop.f32.mrb[0].mxu0
      %537 = vmatprep.mubr.f32.mxu0 0.0
      %538 = vmatmul.mubr.f32.gmra.mrb[0].mxu0 %v461
      %v539 = vpop.f32.mrb[0].mxu0
      %v540 = vadd.f32 0.0, %v539
      %v541 = vpop.f32.mrb[0].mxu0
      %542 = vdwg.mxu0
      %s543 = scalar_lea.vmem %s177, 24
      %544 = vst.msk [vmem:[%s543] sm:$0xff] %vm359, %v530
      %545 = vst.msk [vmem:[%s543 + $0x8] sm:$0xff] %vm359, %v535
      %546 = vst.msk [vmem:[%s543 + $0x10] sm:$0x3] %vm362, %v540
      %s547 = scalar_lea.vmem %s170, 32
      %v548 = vld [vmem:[%s547] sm:$0xff]
      %v549 = vld [vmem:[%s547 + $0x8] sm:$0xff]
      %v550 = vld [vmem:[%s2] sm:$0xff]
      %v551 = vld [vmem:[%s2 + $0x8] sm:$0xff]
      %v552 = vld [vmem:[%s2 + $0x10] sm:$0xff]
      %v554 = vsel %vm184, %v548, 0
      %v557 = vsel %vm184, %v549, 0
      %559 = vmatprep.subr.mxu0 0.0
      %560 = vmatpush1.msra.mxu0 %v550
      %561 = vmatprep.subr.mxu0 0.0
      %562 = vmatpush1.msra.mxu0 %v551
      %563 = vmatprep.subr.mxu0 0.0
      %564 = vmatpush1.msra.mxu0 %v552
      %565 = vmatprep.subr.mxu0 0.0
      %566 = vmatpush1.msra.mxu0 0.0
      %567 = vmatprep.subr.mxu0 0.0
      %568 = vmatpush1.msra.mxu0 0.0
      %569 = vmatprep.subr.mxu0 0.0
      %570 = vmatpush1.msra.mxu0 0.0
      %571 = vmatprep.subr.mxu0 0.0
      %572 = vmatpush1.msra.mxu0 0.0
      %573 = vmatprep.subr.mxu0 0.0
      %574 = vmatpush1.msra.mxu0 0.0
      %575 = vmatprep.subr.mxu0 0.0
      %576 = vmatpush1.msra.mxu0 0.0
      %577 = vmatprep.subr.mxu0 0.0
      %578 = vmatpush1.msra.mxu0 0.0
      %579 = vmatprep.subr.mxu0 0.0
      %580 = vmatpush1.msra.mxu0 0.0
      %581 = vmatprep.subr.mxu0 0.0
      %582 = vmatpush1.msra.mxu0 0.0
      %583 = vmatprep.subr.mxu0 0.0
      %584 = vmatpush1.msra.mxu0 0.0
      %585 = vmatprep.subr.mxu0 0.0
      %586 = vmatpush1.msra.mxu0 0.0
      %587 = vmatprep.subr.mxu0 0.0
      %588 = vmatpush1.msra.mxu0 0.0
      %589 = vmatprep.subr.mxu0 0.0
      %590 = vmatpush1.msra.mxu0 0.0
      %591 = vmatprep.subr.mxu0 0.0
      %592 = vmatpush1.msra.mxu0 0.0
      %593 = vmatprep.subr.mxu0 0.0
      %594 = vmatpush1.msra.mxu0 0.0
      %595 = vmatprep.subr.mxu0 0.0
      %596 = vmatpush1.msra.mxu0 0.0
      %597 = vmatprep.subr.mxu0 0.0
      %598 = vmatpush1.msra.mxu0 0.0
      %599 = vmatprep.subr.mxu0 0.0
      %600 = vmatpush1.msra.mxu0 0.0
      %601 = vmatprep.subr.mxu0 0.0
      %602 = vmatpush1.msra.mxu0 0.0
      %603 = vmatprep.subr.mxu0 0.0
      %604 = vmatpush1.msra.mxu0 0.0
      %605 = vmatprep.subr.mxu0 0.0
      %606 = vmatpush1.msra.mxu0 0.0
      %607 = vmatprep.subr.mxu0 0.0
      %608 = vmatpush1.msra.mxu0 0.0
      %609 = vmatprep.subr.mxu0 0.0
      %610 = vmatpush1.msra.mxu0 0.0
      %611 = vmatprep.subr.mxu0 0.0
      %612 = vmatpush1.msra.mxu0 0.0
      %613 = vmatprep.subr.mxu0 0.0
      %614 = vmatpush1.msra.mxu0 0.0
      %615 = vmatprep.subr.mxu0 0.0
      %616 = vmatpush1.msra.mxu0 0.0
      %617 = vmatprep.subr.mxu0 0.0
      %618 = vmatpush1.msra.mxu0 0.0
      %619 = vmatprep.subr.mxu0 0.0
      %620 = vmatpush1.msra.mxu0 0.0
      %621 = vmatprep.subr.mxu0 0.0
      %622 = vmatpush1.msra.mxu0 0.0
      %623 = vmatprep.mubr.f32.mxu0 0.0
      %624 = vmatmul.mubr.f32.gmra.mrb[0].mxu0 %v554
      %v625 = vpop.f32.mrb[0].mxu0
      %v626 = vadd.f32 0.0, %v625
      %v627 = vpop.f32.mrb[0].mxu0
      %628 = vmatprep.mubr.f32.mxu0 0.0
      %629 = vmatmul.mubr.f32.gmra.mrb[0].mxu0 %v557
      %v630 = vpop.f32.mrb[0].mxu0
      %v631 = vadd.f32 0.0, %v630
      %v632 = vpop.f32.mrb[0].mxu0
      %633 = vdwg.mxu0
      %v634 = vld [vmem:[%s1] sm:$0xff]
      %v635 = vld [vmem:[%s1 + $0x8] sm:$0xff]
      %v636 = vld [vmem:[%s1 + $0x10] sm:$0x3]
      %v638 = vsel %vm269, %v634, 0
      %v641 = vsel %vm269, %v635, 0
      %v644 = vsel %vm269, %v636, 0
      %646 = vmatprep.subr.mxu0 0.0
      %647 = vmatpush1.msra.mxu0 %v626
      %648 = vmatprep.subr.mxu0 0.0
      %649 = vmatpush1.msra.mxu0 %v631
      %650 = vmatprep.subr.mxu0 0.0
      %651 = vmatpush1.msra.mxu0 0.0
      %652 = vmatprep.subr.mxu0 0.0
      %653 = vmatpush1.msra.mxu0 0.0
      %654 = vmatprep.subr.mxu0 0.0
      %655 = vmatpush1.msra.mxu0 0.0
      %656 = vmatprep.subr.mxu0 0.0
      %657 = vmatpush1.msra.mxu0 0.0
      %658 = vmatprep.subr.mxu0 0.0
      %659 = vmatpush1.msra.mxu0 0.0
      %660 = vmatprep.subr.mxu0 0.0
      %661 = vmatpush1.msra.mxu0 0.0
      %662 = vmatprep.subr.mxu0 0.0
      %663 = vmatpush1.msra.mxu0 0.0
      %664 = vmatprep.subr.mxu0 0.0
      %665 = vmatpush1.msra.mxu0 0.0
      %666 = vmatprep.subr.mxu0 0.0
      %667 = vmatpush1.msra.mxu0 0.0
      %668 = vmatprep.subr.mxu0 0.0
      %669 = vmatpush1.msra.mxu0 0.0
      %670 = vmatprep.subr.mxu0 0.0
      %671 = vmatpush1.msra.mxu0 0.0
      %672 = vmatprep.subr.mxu0 0.0
      %673 = vmatpush1.msra.mxu0 0.0
      %674 = vmatprep.subr.mxu0 0.0
      %675 = vmatpush1.msra.mxu0 0.0
      %676 = vmatprep.subr.mxu0 0.0
      %677 = vmatpush1.msra.mxu0 0.0
      %678 = vmatprep.subr.mxu0 0.0
      %679 = vmatpush1.msra.mxu0 0.0
      %680 = vmatprep.subr.mxu0 0.0
      %681 = vmatpush1.msra.mxu0 0.0
      %682 = vmatprep.subr.mxu0 0.0
      %683 = vmatpush1.msra.mxu0 0.0
      %684 = vmatprep.subr.mxu0 0.0
      %685 = vmatpush1.msra.mxu0 0.0
      %686 = vmatprep.subr.mxu0 0.0
      %687 = vmatpush1.msra.mxu0 0.0
      %688 = vmatprep.subr.mxu0 0.0
      %689 = vmatpush1.msra.mxu0 0.0
      %690 = vmatprep.subr.mxu0 0.0
      %691 = vmatpush1.msra.mxu0 0.0
      %692 = vmatprep.subr.mxu0 0.0
      %693 = vmatpush1.msra.mxu0 0.0
      %694 = vmatprep.subr.mxu0 0.0
      %695 = vmatpush1.msra.mxu0 0.0
      %696 = vmatprep.subr.mxu0 0.0
      %697 = vmatpush1.msra.mxu0 0.0
      %698 = vmatprep.subr.mxu0 0.0
      %699 = vmatpush1.msra.mxu0 0.0
      %700 = vmatprep.subr.mxu0 0.0
      %701 = vmatpush1.msra.mxu0 0.0
      %702 = vmatprep.subr.mxu0 0.0
      %703 = vmatpush1.msra.mxu0 0.0
      %704 = vmatprep.subr.mxu0 0.0
      %705 = vmatpush1.msra.mxu0 0.0
      %706 = vmatprep.subr.mxu0 0.0
      %707 = vmatpush1.msra.mxu0 0.0
      %708 = vmatprep.subr.mxu0 0.0
      %709 = vmatpush1.msra.mxu0 0.0
      %710 = vmatprep.mubr.f32.mxu0 0.0
      %711 = vmatmul.mubr.f32.gmra.mrb[0].mxu0 %v638
      %v712 = vpop.f32.mrb[0].mxu0
      %v713 = vadd.f32 0.0, %v712
      %v714 = vpop.f32.mrb[0].mxu0
      %715 = vmatprep.mubr.f32.mxu0 0.0
      %716 = vmatmul.mubr.f32.gmra.mrb[0].mxu0 %v641
      %v717 = vpop.f32.mrb[0].mxu0
      %v718 = vadd.f32 0.0, %v717
      %v719 = vpop.f32.mrb[0].mxu0
      %720 = vmatprep.mubr.f32.mxu0 0.0
      %721 = vmatmul.mubr.f32.gmra.mrb[0].mxu0 %v644
      %v722 = vpop.f32.mrb[0].mxu0
      %v723 = vadd.f32 0.0, %v722
      %v724 = vpop.f32.mrb[0].mxu0
      %725 = vdwg.mxu0
      %s726 = scalar_lea.vmem %s177, 48
      %727 = vst.msk [vmem:[%s726] sm:$0xff] %vm359, %v713
      %728 = vst.msk [vmem:[%s726 + $0x8] sm:$0xff] %vm359, %v718
      %729 = vst.msk [vmem:[%s726 + $0x10] sm:$0x3] %vm362, %v723
      %s730 = scalar_lea.vmem %s170, 48
      %v731 = vld [vmem:[%s730] sm:$0xff]
      %v732 = vld [vmem:[%s730 + $0x8] sm:$0xff]
      %v733 = vld [vmem:[%s2] sm:$0xff]
      %v734 = vld [vmem:[%s2 + $0x8] sm:$0xff]
      %v735 = vld [vmem:[%s2 + $0x10] sm:$0xff]
      %v737 = vsel %vm184, %v731, 0
      %v740 = vsel %vm184, %v732, 0
      %742 = vmatprep.subr.mxu0 0.0
      %743 = vmatpush1.msra.mxu0 %v733
      %744 = vmatprep.subr.mxu0 0.0
      %745 = vmatpush1.msra.mxu0 %v734
      %746 = vmatprep.subr.mxu0 0.0
      %747 = vmatpush1.msra.mxu0 %v735
      %748 = vmatprep.subr.mxu0 0.0
      %749 = vmatpush1.msra.mxu0 0.0
      %750 = vmatprep.subr.mxu0 0.0
      %751 = vmatpush1.msra.mxu0 0.0
      %752 = vmatprep.subr.mxu0 0.0
      %753 = vmatpush1.msra.mxu0 0.0
      %754 = vmatprep.subr.mxu0 0.0
      %755 = vmatpush1.msra.mxu0 0.0
      %756 = vmatprep.subr.mxu0 0.0
      %757 = vmatpush1.msra.mxu0 0.0
      %758 = vmatprep.subr.mxu0 0.0
      %759 = vmatpush1.msra.mxu0 0.0
      %760 = vmatprep.subr.mxu0 0.0
      %761 = vmatpush1.msra.mxu0 0.0
      %762 = vmatprep.subr.mxu0 0.0
      %763 = vmatpush1.msra.mxu0 0.0
      %764 = vmatprep.subr.mxu0 0.0
      %765 = vmatpush1.msra.mxu0 0.0
      %766 = vmatprep.subr.mxu0 0.0
      %767 = vmatpush1.msra.mxu0 0.0
      %768 = vmatprep.subr.mxu0 0.0
      %769 = vmatpush1.msra.mxu0 0.0
      %770 = vmatprep.subr.mxu0 0.0
      %771 = vmatpush1.msra.mxu0 0.0
      %772 = vmatprep.subr.mxu0 0.0
      %773 = vmatpush1.msra.mxu0 0.0
      %774 = vmatprep.subr.mxu0 0.0
      %775 = vmatpush1.msra.mxu0 0.0
      %776 = vmatprep.subr.mxu0 0.0
      %777 = vmatpush1.msra.mxu0 0.0
      %778 = vmatprep.subr.mxu0 0.0
      %779 = vmatpush1.msra.mxu0 0.0
      %780 = vmatprep.subr.mxu0 0.0
      %781 = vmatpush1.msra.mxu0 0.0
      %782 = vmatprep.subr.mxu0 0.0
      %783 = vmatpush1.msra.mxu0 0.0
      %784 = vmatprep.subr.mxu0 0.0
      %785 = vmatpush1.msra.mxu0 0.0
      %786 = vmatprep.subr.mxu0 0.0
      %787 = vmatpush1.msra.mxu0 0.0
      %788 = vmatprep.subr.mxu0 0.0
      %789 = vmatpush1.msra.mxu0 0.0
      %790 = vmatprep.subr.mxu0 0.0
      %791 = vmatpush1.msra.mxu0 0.0
      %792 = vmatprep.subr.mxu0 0.0
      %793 = vmatpush1.msra.mxu0 0.0
      %794 = vmatprep.subr.mxu0 0.0
      %795 = vmatpush1.msra.mxu0 0.0
      %796 = vmatprep.subr.mxu0 0.0
      %797 = vmatpush1.msra.mxu0 0.0
      %798 = vmatprep.subr.mxu0 0.0
      %799 = vmatpush1.msra.mxu0 0.0
      %800 = vmatprep.subr.mxu0 0.0
      %801 = vmatpush1.msra.mxu0 0.0
      %802 = vmatprep.subr.mxu0 0.0
      %803 = vmatpush1.msra.mxu0 0.0
      %804 = vmatprep.subr.mxu0 0.0
      %805 = vmatpush1.msra.mxu0 0.0
      %806 = vmatprep.mubr.f32.mxu0 0.0
      %807 = vmatmul.mubr.f32.gmra.mrb[0].mxu0 %v737
      %v808 = vpop.f32.mrb[0].mxu0
      %v809 = vadd.f32 0.0, %v808
      %v810 = vpop.f32.mrb[0].mxu0
      %811 = vmatprep.mubr.f32.mxu0 0.0
      %812 = vmatmul.mubr.f32.gmra.mrb[0].mxu0 %v740
      %v813 = vpop.f32.mrb[0].mxu0
      %v814 = vadd.f32 0.0, %v813
      %v815 = vpop.f32.mrb[0].mxu0
      %816 = vdwg.mxu0
      %v817 = vld [vmem:[%s1] sm:$0xff]
      %v818 = vld [vmem:[%s1 + $0x8] sm:$0xff]
      %v819 = vld [vmem:[%s1 + $0x10] sm:$0x3]
      %v821 = vsel %vm269, %v817, 0
      %v824 = vsel %vm269, %v818, 0
      %v827 = vsel %vm269, %v819, 0
      %829 = vmatprep.subr.mxu0 0.0
      %830 = vmatpush1.msra.mxu0 %v809
      %831 = vmatprep.subr.mxu0 0.0
      %832 = vmatpush1.msra.mxu0 %v814
      %833 = vmatprep.subr.mxu0 0.0
      %834 = vmatpush1.msra.mxu0 0.0
      %835 = vmatprep.subr.mxu0 0.0
      %836 = vmatpush1.msra.mxu0 0.0
      %837 = vmatprep.subr.mxu0 0.0
      %838 = vmatpush1.msra.mxu0 0.0
      %839 = vmatprep.subr.mxu0 0.0
      %840 = vmatpush1.msra.mxu0 0.0
      %841 = vmatprep.subr.mxu0 0.0
      %842 = vmatpush1.msra.mxu0 0.0
      %843 = vmatprep.subr.mxu0 0.0
      %844 = vmatpush1.msra.mxu0 0.0
      %845 = vmatprep.subr.mxu0 0.0
      %846 = vmatpush1.msra.mxu0 0.0
      %847 = vmatprep.subr.mxu0 0.0
      %848 = vmatpush1.msra.mxu0 0.0
      %849 = vmatprep.subr.mxu0 0.0
      %850 = vmatpush1.msra.mxu0 0.0
      %851 = vmatprep.subr.mxu0 0.0
      %852 = vmatpush1.msra.mxu0 0.0
      %853 = vmatprep.subr.mxu0 0.0
      %854 = vmatpush1.msra.mxu0 0.0
      %855 = vmatprep.subr.mxu0 0.0
      %856 = vmatpush1.msra.mxu0 0.0
      %857 = vmatprep.subr.mxu0 0.0
      %858 = vmatpush1.msra.mxu0 0.0
      %859 = vmatprep.subr.mxu0 0.0
      %860 = vmatpush1.msra.mxu0 0.0
      %861 = vmatprep.subr.mxu0 0.0
      %862 = vmatpush1.msra.mxu0 0.0
      %863 = vmatprep.subr.mxu0 0.0
      %864 = vmatpush1.msra.mxu0 0.0
      %865 = vmatprep.subr.mxu0 0.0
      %866 = vmatpush1.msra.mxu0 0.0
      %867 = vmatprep.subr.mxu0 0.0
      %868 = vmatpush1.msra.mxu0 0.0
      %869 = vmatprep.subr.mxu0 0.0
      %870 = vmatpush1.msra.mxu0 0.0
      %871 = vmatprep.subr.mxu0 0.0
      %872 = vmatpush1.msra.mxu0 0.0
      %873 = vmatprep.subr.mxu0 0.0
      %874 = vmatpush1.msra.mxu0 0.0
      %875 = vmatprep.subr.mxu0 0.0
      %876 = vmatpush1.msra.mxu0 0.0
      %877 = vmatprep.subr.mxu0 0.0
      %878 = vmatpush1.msra.mxu0 0.0
      %879 = vmatprep.subr.mxu0 0.0
      %880 = vmatpush1.msra.mxu0 0.0
      %881 = vmatprep.subr.mxu0 0.0
      %882 = vmatpush1.msra.mxu0 0.0
      %883 = vmatprep.subr.mxu0 0.0
      %884 = vmatpush1.msra.mxu0 0.0
      %885 = vmatprep.subr.mxu0 0.0
      %886 = vmatpush1.msra.mxu0 0.0
      %887 = vmatprep.subr.mxu0 0.0
      %888 = vmatpush1.msra.mxu0 0.0
      %889 = vmatprep.subr.mxu0 0.0
      %890 = vmatpush1.msra.mxu0 0.0
      %891 = vmatprep.subr.mxu0 0.0
      %892 = vmatpush1.msra.mxu0 0.0
      %893 = vmatprep.mubr.f32.mxu0 0.0
      %894 = vmatmul.mubr.f32.gmra.mrb[0].mxu0 %v821
      %v895 = vpop.f32.mrb[0].mxu0
      %v896 = vadd.f32 0.0, %v895
      %v897 = vpop.f32.mrb[0].mxu0
      %898 = vmatprep.mubr.f32.mxu0 0.0
      %899 = vmatmul.mubr.f32.gmra.mrb[0].mxu0 %v824
      %v900 = vpop.f32.mrb[0].mxu0
      %v901 = vadd.f32 0.0, %v900
      %v902 = vpop.f32.mrb[0].mxu0
      %903 = vmatprep.mubr.f32.mxu0 0.0
      %904 = vmatmul.mubr.f32.gmra.mrb[0].mxu0 %v827
      %v905 = vpop.f32.mrb[0].mxu0
      %v906 = vadd.f32 0.0, %v905
      %v907 = vpop.f32.mrb[0].mxu0
      %908 = vdwg.mxu0
      %s909 = scalar_lea.vmem %s177, 72
      %910 = vst.msk [vmem:[%s909] sm:$0xff] %vm359, %v896
      %911 = vst.msk [vmem:[%s909 + $0x8] sm:$0xff] %vm359, %v901
      %912 = vst.msk [vmem:[%s909 + $0x10] sm:$0x3] %vm362, %v906
      %s913 = smul.u32 4, %s14
      %p914 = scmp.lt.s32.totalorder %s913, 31
      %s915 = scalar_select %p914, %s913, 31
      %s916 = smul.addr %s915, 3
      %s917 = smul.addr %s916, 8
      %s918 = scalar_lea.vmem %s3, %s917
      // Predicated region
      $region33: #{tpu_custom_call.1} parent=31 // pred_check
        %p919 = pneg %p100
      $region34: #{tpu_custom_call.1} parent=31 // pred_check_branch
        %921 = sbr.rel (%p919) target = $region36
      $region35: #{tpu_custom_call.1} parent=31 // pred_region
        %s922 = smul.u32 4, %s14
      $region36: #{tpu_custom_call.1} parent=31 // pred_fallthru
        _
    $region32: #{tpu_custom_call.1} parent=5 // pred_fallthru
      _
    %p923 = scmp.le.s32.totalorder 2, %s9
    // Predicated region
    $region37: #{tpu_custom_call.1} parent=5 // pred_check
      %p924 = pneg %p923
    $region38: #{tpu_custom_call.1} parent=5 // pred_check_branch
      %926 = sbr.rel (%p924) target = $region40
    $region39: #{tpu_custom_call.1} parent=5 // pred_region
      %s927 = ssub.s32 %s9, 2
      // Predicated region
      $region41: #{tpu_custom_call.1} parent=39 // pred_check
        %p928 = pneg %p106
      $region42: #{tpu_custom_call.1} parent=39 // pred_check_branch
        %930 = sbr.rel (%p928) target = $region44
      $region43: #{tpu_custom_call.1} parent=39 // pred_region
        %s931 = smul.u32 4, %s15
        %p932 = scmp.lt.s32.totalorder %s931, 31
        %s933 = scalar_select %p932, %s931, 31
        %s934 = smul.addr %s933, 3
        %s935 = smul.addr %s934, 8
        %s936 = scalar_lea.vmem %s3, %s935
      $region44: #{tpu_custom_call.1} parent=39 // pred_fallthru
        _
    $region40: #{tpu_custom_call.1} parent=5 // pred_fallthru
      _
  $region6: #{tpu_custom_call.1} parent=0 // loop_footer
    %s13 = sadd.s32 1, %s9
  $region7: #{tpu_custom_call.1} parent=0 // loop_footer_branch
    %8 = sbr.rel target = $region3
  $region8: #{tpu_custom_call.1} parent=0 // loop_exit
    _

</llo_original>
